<compile_context>
chip_gen: v5e
topology: v5e:2x2
jax: 0.10.0
libtpu: 0.0.40
codegen_flags: <defaults>
</compile_context>

<pallas_src>
import functools

import jax
import jax.numpy as jnp
import numpy as np
from jax import lax
from jax.experimental import pallas as pl
from jax.experimental.pallas import tpu as pltpu

_NEG_INF = -1e30  # finite "minus infinity" (avoids inf-inf NaNs on padded key columns)


def _qkv_proj_kernel(x_ref, w_ref, b_ref, q_ref, k_ref, v_ref, *, out_ch):
    """Fused 1x1-conv Q/K/V projection for one row tile.

    x_ref:     (1, tr, C)  bf16  pixel rows
    w_ref:     (C, 3*O)    bf16  [Wq^T | Wk^T | Wv^T]
    b_ref:     (1, 3*O)    f32   [bq | bk | bv]
    q/k/v_ref: (1, tr, O)  bf16  outputs
    """
    qkv = jnp.dot(x_ref[0], w_ref[...],
                  preferred_element_type=jnp.float32) + b_ref[...]
    qkv = qkv.astype(jnp.bfloat16)
    q_ref[0] = qkv[:, :out_ch]
    k_ref[0] = qkv[:, out_ch:2 * out_ch]
    v_ref[0] = qkv[:, 2 * out_ch:]


def _attn_kernel(q_ref, k_ref, v_ref, o_ref, *, n_valid, n_pad):
    """Single-pass attention for one (batch, query-tile) grid point.

    q_ref: (1, tq, O)     bf16  query tile
    k_ref: (1, n_pad, O)  bf16  full key set for this batch element
    v_ref: (1, n_pad, O)  bf16  full value set
    o_ref: (1, O, tq)     f32   lane-dense output block of (B, O, n_pad)
    """
    q = q_ref[0]
    k = k_ref[0]
    v = v_ref[0]

    # scores[i, j] = sum_o q[i, o] * k[j, o]  -> (tq, n_pad); bf16 in, f32 accumulate.
    s = lax.dot_general(q, k, (((1,), (1,)), ((), ())),
                        preferred_element_type=jnp.float32)

    # Mask padded key columns (code only generated when padding exists).
    if n_valid != n_pad:
        col = lax.broadcasted_iota(jnp.int32, s.shape, 1)
        s = jnp.where(col < n_valid, s, _NEG_INF)

    # Plain (non-online) row softmax over the full key axis.
    m = jnp.max(s, axis=-1, keepdims=True)
    p = jnp.exp(s - m)                                   # EUP
    l = jnp.sum(p, axis=-1, keepdims=True)               # (tq, 1) f32

    acc = jnp.dot(p.astype(jnp.bfloat16), v,
                  preferred_element_type=jnp.float32)    # (tq, O) f32
    out = acc / l                                        # exact normalize, once per output
    # (tq, O) -> (O, tq): XLU transpose so the store is full-lane (128) dense.
    o_ref[0] = jnp.transpose(out, (1, 0))


def attention_forward(x, wq, bq, wk, bk, wv, bv, *, tq=128):
    """x: (B, C, W, H) float32 NCHW.  Returns (B, C, W, H), matching the torch module.

    The torch module's final `.view(B, C, W, H)` only type-checks when
    out_channels == in_channels, so this wrapper requires O == C.
    """
    B, C, W, H = x.shape
    O = wq.shape[0]
    assert O == C, "final .view(B, C, W, H) requires out_channels == in_channels"
    N = W * H
    n_pad = ((N + 127) // 128) * 128
    assert n_pad % tq == 0
    # Full K/V per image held in VMEM (bf16: 2 * n_pad * O * 2 bytes, double-buffered).
    # TODO(synk): re-introduce KV tiling + online softmax for much larger spatial sizes.
    assert n_pad <= 8192, "single-pass kernel assumes W*H <= 8192"

    # Per-pixel layout (B, N, C) so the 1x1 convs become plain row matmuls; bf16 inputs.
    x_nc = jnp.transpose(x.reshape(B, C, N), (0, 2, 1))
    if n_pad != N:
        x_nc = jnp.pad(x_nc, ((0, 0), (0, n_pad - N), (0, 0)))
    x_bf = x_nc.astype(jnp.bfloat16)

    w_qkv_t = jnp.concatenate(
        [jnp.transpose(wq), jnp.transpose(wk), jnp.transpose(wv)], axis=1
    ).astype(jnp.bfloat16)                                         # (C, 3*O)
    b_qkv = jnp.concatenate([bq, bk, bv]).reshape(1, 3 * O).astype(jnp.float32)

    # ---- Prologue: fused Q/K/V projection, computed exactly once (bf16 outputs). ----
    tr = 256 if n_pad % 256 == 0 else 128
    proj = functools.partial(_qkv_proj_kernel, out_ch=O)
    qkv_shape = jax.ShapeDtypeStruct((B, n_pad, O), jnp.bfloat16)
    q, k, v = pl.pallas_call(
        proj,
        out_shape=(qkv_shape, qkv_shape, qkv_shape),
        grid_spec=pltpu.PrefetchScalarGridSpec(
            num_scalar_prefetch=0,
            grid=(B, n_pad // tr),
            in_specs=[
                pl.BlockSpec((1, tr, C), lambda b, i: (b, i, 0)),     # x rows
                pl.BlockSpec((C, 3 * O), lambda b, i: (0, 0)),        # [Wq^T|Wk^T|Wv^T]
                pl.BlockSpec((1, 3 * O), lambda b, i: (0, 0)),        # [bq|bk|bv]
            ],
            out_specs=[
                pl.BlockSpec((1, tr, O), lambda b, i: (b, i, 0)),
                pl.BlockSpec((1, tr, O), lambda b, i: (b, i, 0)),
                pl.BlockSpec((1, tr, O), lambda b, i: (b, i, 0)),
            ],
        ),
        compiler_params=pltpu.CompilerParams(
            dimension_semantics=("parallel", "parallel")),
    )(x_bf, w_qkv_t, b_qkv)

    # ---- Attention: one query tile per grid step, full K/V resident, plain softmax. ----
    attn = functools.partial(_attn_kernel, n_valid=N, n_pad=n_pad)
    out_cn = pl.pallas_call(
        attn,
        out_shape=jax.ShapeDtypeStruct((B, O, n_pad), jnp.float32),
        grid_spec=pltpu.PrefetchScalarGridSpec(
            num_scalar_prefetch=0,
            grid=(B, n_pad // tq),
            in_specs=[
                pl.BlockSpec((1, tq, O), lambda b, qi: (b, qi, 0)),     # q tile
                pl.BlockSpec((1, n_pad, O), lambda b, qi: (b, 0, 0)),   # full K
                pl.BlockSpec((1, n_pad, O), lambda b, qi: (b, 0, 0)),   # full V
            ],
            out_specs=pl.BlockSpec((1, O, tq), lambda b, qi: (b, 0, qi)),
        ),
        compiler_params=pltpu.CompilerParams(
            dimension_semantics=("parallel", "parallel"),
            vmem_limit_bytes=32 * 1024 * 1024,
        ),
    )(q, k, v)

    # (B, O, n_pad) is already channel-major: slice off padded pixels and reshape.
    return out_cn[:, :, :N].reshape(B, C, W, H)


def attention_reference(x, wq, bq, wk, bk, wv, bv):
    """Pure-JAX (f32) reference mirroring the PyTorch forward."""
    B, C, W, H = x.shape
    N = W * H
    xf = x.reshape(B, C, N)
    q = jnp.einsum("oc,bcn->bon", wq, xf) + bq[None, :, None]   # (B, O, N)
    k = jnp.einsum("oc,bcn->bon", wk, xf) + bk[None, :, None]
    v = jnp.einsum("oc,bcn->bon", wv, xf) + bv[None, :, None]
    query = jnp.transpose(q, (0, 2, 1))                          # (B, N, O)
    scores = jnp.einsum("bno,bom->bnm", query, k)                # (B, N, N)
    attn = jax.nn.softmax(scores, axis=-1)
    out = jnp.einsum("bon,bmn->bom", v, attn)                    # value @ attn^T
    return out.reshape(B, C, W, H)


if __name__ == "__main__":
    # The PyTorch module's final view(B, C, W, H) only works when out_channels ==
    # in_channels, so use C = O = 64 (matching out_channels = 64 in the spec).
    B, C, W, H = 2, 64, 16, 16
    O = C

    key = jax.random.PRNGKey(0)
    kx, kwq, kbq, kwk, kbk, kwv, kbv = jax.random.split(key, 7)
    bound = 1.0 / np.sqrt(C)  # nn.Conv2d default init range (fan_in = C*1*1)
    x = jax.random.normal(kx, (B, C, W, H), dtype=jnp.float32)
    wq = jax.random.uniform(kwq, (O, C), jnp.float32, -bound, bound)
    bq = jax.random.uniform(kbq, (O,), jnp.float32, -bound, bound)
    wk = jax.random.uniform(kwk, (O, C), jnp.float32, -bound, bound)
    bk = jax.random.uniform(kbk, (O,), jnp.float32, -bound, bound)
    wv = jax.random.uniform(kwv, (O, C), jnp.float32, -bound, bound)
    bv = jax.random.uniform(kbv, (O,), jnp.float32, -bound, bound)

    out = jax.block_until_ready(attention_forward(x, wq, bq, wk, bk, wv, bv))
    ref = jax.block_until_ready(attention_reference(x, wq, bq, wk, bk, wv, bv))

    # Loose tolerance: projections and both attention matmuls take bf16 inputs
    # (f32 accumulation), per the perf review; reference is full f32.
    np.testing.assert_allclose(np.asarray(out), np.asarray(ref), rtol=5e-2, atol=5e-2)

    print("KERNEL_OK")
</pallas_src>

<mosaic_0001>
module attributes {stable_mosaic.version = 11 : i64} {
  func.func @_qkv_proj_kernel(%arg0: i32, %arg1: i32, %arg2: memref<1x256x64xbf16, #tpu.memory_space<vmem>>, %arg3: memref<64x192xbf16, #tpu.memory_space<vmem>>, %arg4: memref<1x192xf32, #tpu.memory_space<vmem>>, %arg5: memref<1x256x64xbf16, #tpu.memory_space<vmem>>, %arg6: memref<1x256x64xbf16, #tpu.memory_space<vmem>>, %arg7: memref<1x256x64xbf16, #tpu.memory_space<vmem>>) attributes {dimension_semantics = [#tpu.dimension_semantics<parallel>, #tpu.dimension_semantics<parallel>], iteration_bounds = array<i64: 2, 1>, scalar_prefetch = 0 : i64, scratch_operands = 0 : i64, tpu.core_type = #tpu.core_type<tc>, window_params = [{transform_indices = @transform_0, window_bounds = array<i64: 1, 256, 64>}, {pipeline_mode = #tpu.pipeline_mode<synchronous>, transform_indices = @transform_1, window_bounds = array<i64: 64, 192>}, {pipeline_mode = #tpu.pipeline_mode<synchronous>, transform_indices = @transform_2, window_bounds = array<i64: 1, 192>}, {transform_indices = @transform_3, window_bounds = array<i64: 1, 256, 64>}, {transform_indices = @transform_4, window_bounds = array<i64: 1, 256, 64>}, {transform_indices = @transform_5, window_bounds = array<i64: 1, 256, 64>}]} {
    %c0 = arith.constant 0 : index
    %c0_0 = arith.constant 0 : index
    %c0_1 = arith.constant 0 : index
    %0 = vector.load %arg2[%c0, %c0_0, %c0_1] : memref<1x256x64xbf16, #tpu.memory_space<vmem>>, vector<1x256x64xbf16>
    %1 = vector.shape_cast %0 : vector<1x256x64xbf16> to vector<256x64xbf16>
    %c0_2 = arith.constant 0 : index
    %c0_3 = arith.constant 0 : index
    %2 = vector.load %arg3[%c0_2, %c0_3] : memref<64x192xbf16, #tpu.memory_space<vmem>>, vector<64x192xbf16>
    %cst = arith.constant dense<0.000000e+00> : vector<256x192xf32>
    %3 = tpu.matmul %1, %2, %cst {dimension_numbers = #tpu.dot_dimension_numbers<[1], [0], [0], [1], [0, 0, 1, 1], [], []>} : vector<256x64xbf16>, vector<64x192xbf16>, vector<256x192xf32> -> vector<256x192xf32>
    %c0_4 = arith.constant 0 : index
    %c0_5 = arith.constant 0 : index
    %4 = vector.load %arg4[%c0_4, %c0_5] : memref<1x192xf32, #tpu.memory_space<vmem>>, vector<1x192xf32>
    %5 = vector.broadcast %4 : vector<1x192xf32> to vector<256x192xf32>
    %6 = arith.addf %3, %5 : vector<256x192xf32>
    %7 = arith.truncf %6 : vector<256x192xf32> to vector<256x192xbf16>
    %8 = vector.extract_strided_slice %7 {offsets = [0, 0], sizes = [256, 64], strides = [1, 1]} : vector<256x192xbf16> to vector<256x64xbf16>
    %c0_6 = arith.constant 0 : index
    %c0_7 = arith.constant 0 : index
    %c0_8 = arith.constant 0 : index
    %9 = vector.load %arg5[%c0_6, %c0_7, %c0_8] : memref<1x256x64xbf16, #tpu.memory_space<vmem>>, vector<1x256x64xbf16>
    %10 = vector.shape_cast %9 : vector<1x256x64xbf16> to vector<256x64xbf16>
    %11 = vector.shape_cast %8 : vector<256x64xbf16> to vector<1x256x64xbf16>
    tpu.vector_store %arg5[%c0_6, %c0_7, %c0_8], %11 {strides = array<i32>} : memref<1x256x64xbf16, #tpu.memory_space<vmem>>, vector<1x256x64xbf16>,
    %12 = vector.extract_strided_slice %7 {offsets = [0, 64], sizes = [256, 64], strides = [1, 1]} : vector<256x192xbf16> to vector<256x64xbf16>
    %c0_9 = arith.constant 0 : index
    %c0_10 = arith.constant 0 : index
    %c0_11 = arith.constant 0 : index
    %13 = vector.load %arg6[%c0_9, %c0_10, %c0_11] : memref<1x256x64xbf16, #tpu.memory_space<vmem>>, vector<1x256x64xbf16>
    %14 = vector.shape_cast %13 : vector<1x256x64xbf16> to vector<256x64xbf16>
    %15 = vector.shape_cast %12 : vector<256x64xbf16> to vector<1x256x64xbf16>
    tpu.vector_store %arg6[%c0_9, %c0_10, %c0_11], %15 {strides = array<i32>} : memref<1x256x64xbf16, #tpu.memory_space<vmem>>, vector<1x256x64xbf16>,
    %16 = vector.extract_strided_slice %7 {offsets = [0, 128], sizes = [256, 64], strides = [1, 1]} : vector<256x192xbf16> to vector<256x64xbf16>
    %c0_12 = arith.constant 0 : index
    %c0_13 = arith.constant 0 : index
    %c0_14 = arith.constant 0 : index
    %17 = vector.load %arg7[%c0_12, %c0_13, %c0_14] : memref<1x256x64xbf16, #tpu.memory_space<vmem>>, vector<1x256x64xbf16>
    %18 = vector.shape_cast %17 : vector<1x256x64xbf16> to vector<256x64xbf16>
    %19 = vector.shape_cast %16 : vector<256x64xbf16> to vector<1x256x64xbf16>
    tpu.vector_store %arg7[%c0_12, %c0_13, %c0_14], %19 {strides = array<i32>} : memref<1x256x64xbf16, #tpu.memory_space<vmem>>, vector<1x256x64xbf16>,
    return
  }
  func.func @transform_0(%arg0: i32, %arg1: i32) -> (i32, i32, i32) {
    %c0_i32 = arith.constant 0 : i32
    %c0_i32_0 = arith.constant 0 : i32
    return %arg0, %arg1, %c0_i32 : i32, i32, i32
  }
  func.func @transform_1(%arg0: i32, %arg1: i32) -> (i32, i32) {
    %c0_i32 = arith.constant 0 : i32
    %c0_i32_0 = arith.constant 0 : i32
    %c0_i32_1 = arith.constant 0 : i32
    return %c0_i32, %c0_i32_0 : i32, i32
  }
  func.func @transform_2(%arg0: i32, %arg1: i32) -> (i32, i32) {
    %c0_i32 = arith.constant 0 : i32
    %c0_i32_0 = arith.constant 0 : i32
    %c0_i32_1 = arith.constant 0 : i32
    return %c0_i32, %c0_i32_0 : i32, i32
  }
  func.func @transform_3(%arg0: i32, %arg1: i32) -> (i32, i32, i32) {
    %c0_i32 = arith.constant 0 : i32
    %c0_i32_0 = arith.constant 0 : i32
    return %arg0, %arg1, %c0_i32 : i32, i32, i32
  }
  func.func @transform_4(%arg0: i32, %arg1: i32) -> (i32, i32, i32) {
    %c0_i32 = arith.constant 0 : i32
    %c0_i32_0 = arith.constant 0 : i32
    return %arg0, %arg1, %c0_i32 : i32, i32, i32
  }
  func.func @transform_5(%arg0: i32, %arg1: i32) -> (i32, i32, i32) {
    %c0_i32 = arith.constant 0 : i32
    %c0_i32_0 = arith.constant 0 : i32
    return %arg0, %arg1, %c0_i32 : i32, i32, i32
  }
}

</mosaic_0001>

<llo_original>
// kernel: tpu_custom_call.1
$region0: #{tpu_custom_call.1}
  #allocation0 [shape = 'u32[]', space=smem, size = 0x4, offset = 0x4, fixed_abs, tag = 'smem constant byte address 0x4 - core index']
  #allocation1 [shape = 'u32[72,128]{1,0:T(1,128)}', space=vmem, size = 0x9000, scoped, tag = 'internal scratch']
  %s0 = inlined_call_operand.vmem [shape: bf16[2,256,64], index: 0, kind: input, shape index: {}]
  %s1 = inlined_call_operand.vmem [shape: bf16[64,192], index: 1, kind: input, shape index: {}]
  %s2 = inlined_call_operand.vmem [shape: f32[1,192], index: 2, kind: input, shape index: {}]
  %s3 = inlined_call_operand.vmem [shape: bf16[2,256,64], index: 3, kind: output, shape index: {0}]
  %s4 = inlined_call_operand.vmem [shape: bf16[2,256,64], index: 4, kind: output, shape index: {1}]
  %s5 = inlined_call_operand.vmem [shape: bf16[2,256,64], index: 5, kind: output, shape index: {2}]
  %6 = xla_tuple %s3, %s4, %s5
  %s7 = sld [smem:[#allocation0]]
  $region61: #{tpu_custom_call.1} parent=0
    _
  %s9 = ssub.s32 1, %s7
  %s10 = scalar_select 0, %s9, %s7
  loop: start=0, step=1, limit=4
  $region2: #{tpu_custom_call.1} parent=0 // loop_pre_header
    _
  $region3: #{tpu_custom_call.1} parent=0 // loop_header
    %s12 = sphi 0, %s16
    %p13 = scmp.ge.s32.totalorder %s12, 4
    %s19 = sphi 0, %s31
    %s20 = sphi 0, %s27
    %s21 = sphi 0, %s19
    %s22 = sphi 0, %s20
    %s23 = sphi 0, %s21
    %s24 = sphi 0, %s22
    %s36 = sphi 0, %s38
    %s39 = sphi 0, %s36
    %s40 = sphi 0, %s39
    %s56 = sphi 0, %s40
    %s60 = sphi 0, %s60
    %s62 = sphi 0, %s60
    %s63 = sphi 0, %s62
    %s77 = sphi 0, %s63
    %s81 = sphi 0, %s81
    %s83 = sphi 0, %s81
    %s84 = sphi 0, %s83
    %s98 = sphi 0, %s84
    %s106 = sphi 0, %s108
    %s109 = sphi 0, %s106
    %s110 = sphi 0, %s109
    %s126 = sphi 0, %s110
    %s134 = sphi 0, %s136
    %s137 = sphi 0, %s134
    %s138 = sphi 0, %s137
    %s154 = sphi 0, %s138
    %s162 = sphi 0, %s164
    %s165 = sphi 0, %s162
    %s166 = sphi 0, %s165
    %s182 = sphi 0, %s166
  $region4: #{tpu_custom_call.1} parent=0 // loop_header_branch
    %15 = sbr.rel (%p13) target = $region8
  $region5: #{tpu_custom_call.1} parent=0 // loop_body
    %s17 = ssub.s32 %s12, 1
    %s18 = ssub.s32 %s12, 2
    %s25 = sadd.s32 1, %s20
    %p26 = scmp.ge.s32.totalorder %s25, 1
    %s27 = scalar_select %p26, 0, %s25
    %s28 = sadd.s32 1, %s19
    %s29 = scalar_select %p26, %s28, %s19
    %p30 = scmp.ge.s32.totalorder %s29, 2
    %s31 = scalar_select %p30, 0, %s29
    %s32 = ssub.s32 %s19, %s31
    %s33 = ssub.s32 %s20, %s27
    %s34 = sor.u32 %s32, %s33
    %p35 = scmp.eq.s32.totalorder %s34, 0
    %s37 = sadd.s32 %s36, 1
    %s38 = scalar_select %p35, %s36, %s37
    %p41 = pneg %p35
    %p42 = scmp.eq.s32.totalorder %s12, 1
    %p43 = por %p41, %p42
    %p44 = scmp.ne.s32.totalorder %s36, %s39
    %p45 = scmp.eq.s32.totalorder %s12, 0
    %p46 = por %p44, %p45
    %p47 = scmp.ne.s32.totalorder %s36, %s39
    %p48 = scmp.eq.s32.totalorder %s17, 1
    %p49 = por %p47, %p48
    %p50 = scmp.ne.s32.totalorder %s39, %s40
    %p51 = scmp.eq.s32.totalorder %s17, 0
    %p52 = por %p50, %p51
    %p53 = scmp.ne.s32.totalorder %s39, %s40
    %p54 = scmp.eq.s32.totalorder %s18, 1
    %p55 = por %p53, %p54
    %p57 = scmp.ne.s32.totalorder %s40, %s56
    %p58 = scmp.eq.s32.totalorder %s18, 0
    %p59 = por %p57, %p58
    %s61 = sadd.s32 %s60, 1
    %p64 = scmp.eq.s32.totalorder %s12, 1
    %p65 = scmp.ne.s32.totalorder %s60, %s62
    %p66 = scmp.eq.s32.totalorder %s12, 0
    %p67 = por %p65, %p66
    %p68 = scmp.ne.s32.totalorder %s60, %s62
    %p69 = scmp.eq.s32.totalorder %s17, 1
    %p70 = por %p68, %p69
    %p71 = scmp.ne.s32.totalorder %s62, %s63
    %p72 = scmp.eq.s32.totalorder %s17, 0
    %p73 = por %p71, %p72
    %p74 = scmp.ne.s32.totalorder %s62, %s63
    %p75 = scmp.eq.s32.totalorder %s18, 1
    %p76 = por %p74, %p75
    %p78 = scmp.ne.s32.totalorder %s63, %s77
    %p79 = scmp.eq.s32.totalorder %s18, 0
    %p80 = por %p78, %p79
    %s82 = sadd.s32 %s81, 1
    %p85 = scmp.eq.s32.totalorder %s12, 1
    %p86 = scmp.ne.s32.totalorder %s81, %s83
    %p87 = scmp.eq.s32.totalorder %s12, 0
    %p88 = por %p86, %p87
    %p89 = scmp.ne.s32.totalorder %s81, %s83
    %p90 = scmp.eq.s32.totalorder %s17, 1
    %p91 = por %p89, %p90
    %p92 = scmp.ne.s32.totalorder %s83, %s84
    %p93 = scmp.eq.s32.totalorder %s17, 0
    %p94 = por %p92, %p93
    %p95 = scmp.ne.s32.totalorder %s83, %s84
    %p96 = scmp.eq.s32.totalorder %s18, 1
    %p97 = por %p95, %p96
    %p99 = scmp.ne.s32.totalorder %s84, %s98
    %p100 = scmp.eq.s32.totalorder %s18, 0
    %p101 = por %p99, %p100
    %s102 = ssub.s32 %s19, %s31
    %s103 = ssub.s32 %s20, %s27
    %s104 = sor.u32 %s102, %s103
    %p105 = scmp.eq.s32.totalorder %s104, 0
    %s107 = sadd.s32 %s106, 1
    %s108 = scalar_select %p105, %s106, %s107
    %p111 = pneg %p105
    %p112 = scmp.eq.s32.totalorder %s12, 1
    %p113 = por %p111, %p112
    %p114 = scmp.ne.s32.totalorder %s106, %s109
    %p115 = scmp.eq.s32.totalorder %s12, 0
    %p116 = por %p114, %p115
    %p117 = scmp.ne.s32.totalorder %s106, %s109
    %p118 = scmp.eq.s32.totalorder %s17, 1
    %p119 = por %p117, %p118
    %p120 = scmp.ne.s32.totalorder %s109, %s110
    %p121 = scmp.eq.s32.totalorder %s17, 0
    %p122 = por %p120, %p121
    %p123 = scmp.ne.s32.totalorder %s109, %s110
    %p124 = scmp.eq.s32.totalorder %s18, 1
    %p125 = por %p123, %p124
    %p127 = scmp.ne.s32.totalorder %s110, %s126
    %p128 = scmp.eq.s32.totalorder %s18, 0
    %p129 = por %p127, %p128
    %s130 = ssub.s32 %s19, %s31
    %s131 = ssub.s32 %s20, %s27
    %s132 = sor.u32 %s130, %s131
    %p133 = scmp.eq.s32.totalorder %s132, 0
    %s135 = sadd.s32 %s134, 1
    %s136 = scalar_select %p133, %s134, %s135
    %p139 = pneg %p133
    %p140 = scmp.eq.s32.totalorder %s12, 1
    %p141 = por %p139, %p140
    %p142 = scmp.ne.s32.totalorder %s134, %s137
    %p143 = scmp.eq.s32.totalorder %s12, 0
    %p144 = por %p142, %p143
    %p145 = scmp.ne.s32.totalorder %s134, %s137
    %p146 = scmp.eq.s32.totalorder %s17, 1
    %p147 = por %p145, %p146
    %p148 = scmp.ne.s32.totalorder %s137, %s138
    %p149 = scmp.eq.s32.totalorder %s17, 0
    %p150 = por %p148, %p149
    %p151 = scmp.ne.s32.totalorder %s137, %s138
    %p152 = scmp.eq.s32.totalorder %s18, 1
    %p153 = por %p151, %p152
    %p155 = scmp.ne.s32.totalorder %s138, %s154
    %p156 = scmp.eq.s32.totalorder %s18, 0
    %p157 = por %p155, %p156
    %s158 = ssub.s32 %s19, %s31
    %s159 = ssub.s32 %s20, %s27
    %s160 = sor.u32 %s158, %s159
    %p161 = scmp.eq.s32.totalorder %s160, 0
    %s163 = sadd.s32 %s162, 1
    %s164 = scalar_select %p161, %s162, %s163
    %p167 = pneg %p161
    %p168 = scmp.eq.s32.totalorder %s12, 1
    %p169 = por %p167, %p168
    %p170 = scmp.ne.s32.totalorder %s162, %s165
    %p171 = scmp.eq.s32.totalorder %s12, 0
    %p172 = por %p170, %p171
    %p173 = scmp.ne.s32.totalorder %s162, %s165
    %p174 = scmp.eq.s32.totalorder %s17, 1
    %p175 = por %p173, %p174
    %p176 = scmp.ne.s32.totalorder %s165, %s166
    %p177 = scmp.eq.s32.totalorder %s17, 0
    %p178 = por %p176, %p177
    %p179 = scmp.ne.s32.totalorder %s165, %s166
    %p180 = scmp.eq.s32.totalorder %s18, 1
    %p181 = por %p179, %p180
    %p183 = scmp.ne.s32.totalorder %s166, %s182
    %p184 = scmp.eq.s32.totalorder %s18, 0
    %p185 = por %p183, %p184
    %p186 = scmp.le.s32.totalorder 1, %s12
    %p187 = scmp.lt.s32.totalorder %s12, 3
    %p188 = pnand %p186, %p187
    %p189 = pneg %p188
    // Predicated region
    $region9: #{tpu_custom_call.1} parent=5 // pred_check
      _
    $region10: #{tpu_custom_call.1} parent=5 // pred_check_branch
      %191 = sbr.rel (%p188) target = $region12
    $region11: #{tpu_custom_call.1} parent=5 // pred_region
      %s192 = ssub.s32 %s12, 1
      // Predicated region
      $region13: #{tpu_custom_call.1} parent=11 // pred_check
        %p193 = pneg %p73
      $region14: #{tpu_custom_call.1} parent=11 // pred_check_branch
        %195 = sbr.rel (%p193) target = $region16
      $region15: #{tpu_custom_call.1} parent=11 // pred_region
        _
      $region16: #{tpu_custom_call.1} parent=11 // pred_fallthru
        _
      // Predicated region
      $region17: #{tpu_custom_call.1} parent=11 // pred_check
        %p196 = pneg %p94
      $region18: #{tpu_custom_call.1} parent=11 // pred_check_branch
        %198 = sbr.rel (%p196) target = $region20
      $region19: #{tpu_custom_call.1} parent=11 // pred_region
        _
      $region20: #{tpu_custom_call.1} parent=11 // pred_fallthru
        _
    $region12: #{tpu_custom_call.1} parent=5 // pred_fallthru
      _
    %p199 = scmp.lt.s32.totalorder %s12, 2
    // Predicated region
    $region21: #{tpu_custom_call.1} parent=5 // pred_check
      %p200 = pneg %p199
    $region22: #{tpu_custom_call.1} parent=5 // pred_check_branch
      %202 = sbr.rel (%p200) target = $region24
    $region23: #{tpu_custom_call.1} parent=5 // pred_region
      // Predicated region
      $region25: #{tpu_custom_call.1} parent=23 // pred_check
        %p203 = pneg %p46
      $region26: #{tpu_custom_call.1} parent=23 // pred_check_branch
        %205 = sbr.rel (%p203) target = $region28
      $region27: #{tpu_custom_call.1} parent=23 // pred_region
        %s206 = smul.u32 32, %s20
        %p207 = scmp.lt.s32.totalorder %s19, 1
        %s208 = scalar_select %p207, %s19, 1
        %p209 = scmp.lt.s32.totalorder %s206, 31
        %s210 = scalar_select %p209, %s206, 31
        %s211 = smul.addr %s208, 32
        %s212 = sadd.s32 %s210, %s211
        %s213 = smul.addr %s212, 4
        %s214 = scalar_lea.vmem %s0, %s213
        %s215 = smul.u32 32, %s20
      $region28: #{tpu_custom_call.1} parent=23 // pred_fallthru
        _
    $region24: #{tpu_custom_call.1} parent=5 // pred_fallthru
      _
    %p216 = scmp.le.s32.totalorder 1, %s12
    %p217 = scmp.lt.s32.totalorder %s12, 3
    %p218 = pnand %p216, %p217
    %p219 = pneg %p218
    // Predicated region
    $region29: #{tpu_custom_call.1} parent=5 // pred_check
      _
    $region30: #{tpu_custom_call.1} parent=5 // pred_check_branch
      %221 = sbr.rel (%p218) target = $region32
    $region31: #{tpu_custom_call.1} parent=5 // pred_region
      %s222 = ssub.s32 %s12, 1
      %s223 = smul.u32 32, %s22
      %p224 = scmp.lt.s32.totalorder %s21, 1
      %s225 = scalar_select %p224, %s21, 1
      %p226 = scmp.lt.s32.totalorder %s223, 31
      %s227 = scalar_select %p226, %s223, 31
      %s228 = smul.addr %s225, 32
      %s229 = sadd.s32 %s227, %s228
      %s230 = smul.addr %s229, 4
      %s231 = scalar_lea.vmem %s0, %s230
      %p232 = pneg %p52
      %p233 = pneg %p49
      %p234 = pneg %p73
      %p235 = pneg %p70
      %p236 = pneg %p94
      %p237 = pneg %p91
      %p238 = pneg %p122
      %p239 = pneg %p119
      %s240 = smul.u32 32, %s22
      %p241 = scmp.lt.s32.totalorder %s21, 1
      %s242 = scalar_select %p241, %s21, 1
      %p243 = scmp.lt.s32.totalorder %s240, 31
      %s244 = scalar_select %p243, %s240, 31
      %s245 = smul.addr %s242, 32
      %s246 = sadd.s32 %s244, %s245
      %s247 = smul.addr %s246, 4
      %s248 = scalar_lea.vmem %s3, %s247
      %p249 = pneg %p150
      %p250 = pneg %p147
      %s251 = smul.u32 32, %s22
      %p252 = scmp.lt.s32.totalorder %s21, 1
      %s253 = scalar_select %p252, %s21, 1
      %p254 = scmp.lt.s32.totalorder %s251, 31
      %s255 = scalar_select %p254, %s251, 31
      %s256 = smul.addr %s253, 32
      %s257 = sadd.s32 %s255, %s256
      %s258 = smul.addr %s257, 4
      %s259 = scalar_lea.vmem %s4, %s258
      %p260 = pneg %p178
      %p261 = pneg %p175
      %s262 = smul.u32 32, %s22
      %p263 = scmp.lt.s32.totalorder %s21, 1
      %s264 = scalar_select %p263, %s21, 1
      %p265 = scmp.lt.s32.totalorder %s262, 31
      %s266 = scalar_select %p265, %s262, 31
      %s267 = smul.addr %s264, 32
      %s268 = sadd.s32 %s266, %s267
      %s269 = smul.addr %s268, 4
      %s270 = scalar_lea.vmem %s5, %s269
      %s271 = smul.u32 32, %s22
      %p272 = scmp.lt.s32.totalorder %s21, 1
      %s273 = scalar_select %p272, %s21, 1
      %p274 = scmp.lt.s32.totalorder %s271, 31
      %s275 = scalar_select %p274, %s271, 31
      %s276 = smul.addr %s273, 32
      %s277 = sadd.s32 %s275, %s276
      %s278 = smul.addr %s277, 4
      %s279 = scalar_lea.vmem %s0, %s278
      %s280 = smul.u32 32, %s22
      %s281 = smul.u32 32, %s22
      %p282 = scmp.lt.s32.totalorder %s21, 1
      %s283 = scalar_select %p282, %s21, 1
      %p284 = scmp.lt.s32.totalorder %s281, 31
      %s285 = scalar_select %p284, %s281, 31
      %s286 = smul.addr %s283, 32
      %s287 = sadd.s32 %s285, %s286
      %s288 = smul.addr %s287, 4
      %s289 = scalar_lea.vmem %s3, %s288
      %s290 = smul.u32 32, %s22
      %s291 = smul.u32 32, %s22
      %p292 = scmp.lt.s32.totalorder %s21, 1
      %s293 = scalar_select %p292, %s21, 1
      %p294 = scmp.lt.s32.totalorder %s291, 31
      %s295 = scalar_select %p294, %s291, 31
      %s296 = smul.addr %s293, 32
      %s297 = sadd.s32 %s295, %s296
      %s298 = smul.addr %s297, 4
      %s299 = scalar_lea.vmem %s4, %s298
      %s300 = smul.u32 32, %s22
      %s301 = smul.u32 32, %s22
      %p302 = scmp.lt.s32.totalorder %s21, 1
      %s303 = scalar_select %p302, %s21, 1
      %p304 = scmp.lt.s32.totalorder %s301, 31
      %s305 = scalar_select %p304, %s301, 31
      %s306 = smul.addr %s303, 32
      %s307 = sadd.s32 %s305, %s306
      %s308 = smul.addr %s307, 4
      %s309 = scalar_lea.vmem %s5, %s308
      %s310 = smul.u32 32, %s22
      %v312 = vld [vmem:[%s279] sm:$0xf]
      %v313 = vld [vmem:[%s279 + $0x4] sm:$0xf]
      %v314 = vld [vmem:[%s279 + $0x8] sm:$0xf]
      %v315 = vld [vmem:[%s279 + $0xc] sm:$0xf]
      %v316 = vld [vmem:[%s279 + $0x10] sm:$0xf]
      %v317 = vld [vmem:[%s279 + $0x14] sm:$0xf]
      %v318 = vld [vmem:[%s279 + $0x18] sm:$0xf]
      %v319 = vld [vmem:[%s279 + $0x1c] sm:$0xf]
      %v320 = vld [vmem:[%s279 + $0x20] sm:$0xf]
      %v321 = vld [vmem:[%s279 + $0x24] sm:$0xf]
      %v322 = vld [vmem:[%s279 + $0x28] sm:$0xf]
      %v323 = vld [vmem:[%s279 + $0x2c] sm:$0xf]
      %v324 = vld [vmem:[%s279 + $0x30] sm:$0xf]
      %v325 = vld [vmem:[%s279 + $0x34] sm:$0xf]
      %v326 = vld [vmem:[%s279 + $0x38] sm:$0xf]
      %v327 = vld [vmem:[%s279 + $0x3c] sm:$0xf]
      %v328 = vld [vmem:[%s279 + $0x40] sm:$0xf]
      %v329 = vld [vmem:[%s279 + $0x44] sm:$0xf]
      %v330 = vld [vmem:[%s279 + $0x48] sm:$0xf]
      %v331 = vld [vmem:[%s279 + $0x4c] sm:$0xf]
      %v332 = vld [vmem:[%s279 + $0x50] sm:$0xf]
      %v333 = vld [vmem:[%s279 + $0x54] sm:$0xf]
      %v334 = vld [vmem:[%s279 + $0x58] sm:$0xf]
      %v335 = vld [vmem:[%s279 + $0x5c] sm:$0xf]
      %v336 = vld [vmem:[%s279 + $0x60] sm:$0xf]
      %v337 = vld [vmem:[%s279 + $0x64] sm:$0xf]
      %v338 = vld [vmem:[%s279 + $0x68] sm:$0xf]
      %v339 = vld [vmem:[%s279 + $0x6c] sm:$0xf]
      %v340 = vld [vmem:[%s279 + $0x70] sm:$0xf]
      %v341 = vld [vmem:[%s279 + $0x74] sm:$0xf]
      %v342 = vld [vmem:[%s279 + $0x78] sm:$0xf]
      %v343 = vld [vmem:[%s279 + $0x7c] sm:$0xf]
      %v344 = vld [vmem:[%s1] sm:$0xff]
      %v345 = vld [vmem:[%s1 + $0x8] sm:$0xff]
      %v346 = vld [vmem:[%s1 + $0x10] sm:$0xff]
      %v347 = vld [vmem:[%s1 + $0x18] sm:$0xff]
      %v348 = vld [vmem:[%s1 + $0x20] sm:$0xff]
      %v349 = vld [vmem:[%s1 + $0x28] sm:$0xff]
      %v350 = vld [vmem:[%s1 + $0x30] sm:$0xff]
      %v351 = vld [vmem:[%s1 + $0x38] sm:$0xff]
      %v352 = vld [vmem:[%s2] sm:$0x3]
      %v354 = vperm.slane %v352, 0
      %v355 = vperm.slane %v352, 1
      %v390 = vunpack.c.l.b16 %v312
      %v391 = vunpack.c.l.b16 %v313
      %v392 = vunpack.c.l.b16 %v314
      %v393 = vunpack.c.l.b16 %v315
      %v394 = vunpack.c.l.b16 %v316
      %v395 = vunpack.c.l.b16 %v317
      %v396 = vunpack.c.l.b16 %v318
      %v397 = vunpack.c.l.b16 %v319
      %v398 = vunpack.c.l.b16 %v320
      %v399 = vunpack.c.l.b16 %v321
      %v400 = vunpack.c.l.b16 %v322
      %v401 = vunpack.c.l.b16 %v323
      %v402 = vunpack.c.l.b16 %v324
      %v403 = vunpack.c.l.b16 %v325
      %v404 = vunpack.c.l.b16 %v326
      %v405 = vunpack.c.l.b16 %v327
      %v406 = vunpack.c.l.b16 %v328
      %v407 = vunpack.c.l.b16 %v329
      %v408 = vunpack.c.l.b16 %v330
      %v409 = vunpack.c.l.b16 %v331
      %v410 = vunpack.c.l.b16 %v332
      %v411 = vunpack.c.l.b16 %v333
      %v412 = vunpack.c.l.b16 %v334
      %v413 = vunpack.c.l.b16 %v335
      %v414 = vunpack.c.l.b16 %v336
      %v415 = vunpack.c.l.b16 %v337
      %v416 = vunpack.c.l.b16 %v338
      %v417 = vunpack.c.l.b16 %v339
      %v418 = vunpack.c.l.b16 %v340
      %v419 = vunpack.c.l.b16 %v341
      %v420 = vunpack.c.l.b16 %v342
      %v421 = vunpack.c.l.b16 %v343
      %v422 = vpack.c.b16 %v391, %v390
      %v423 = vpack.c.b16 %v393, %v392
      %v424 = vpack.c.b16 %v395, %v394
      %v425 = vpack.c.b16 %v397, %v396
      %v426 = vpack.c.b16 %v399, %v398
      %v427 = vpack.c.b16 %v401, %v400
      %v428 = vpack.c.b16 %v403, %v402
      %v429 = vpack.c.b16 %v405, %v404
      %v430 = vpack.c.b16 %v407, %v406
      %v431 = vpack.c.b16 %v409, %v408
      %v432 = vpack.c.b16 %v411, %v410
      %v433 = vpack.c.b16 %v413, %v412
      %v434 = vpack.c.b16 %v415, %v414
      %v435 = vpack.c.b16 %v417, %v416
      %v436 = vpack.c.b16 %v419, %v418
      %v437 = vpack.c.b16 %v421, %v420
      %v446 = vunpack.c.l.b16 %v344
      %v447 = vunpack.c.h.b16 %v344
      %v448 = vunpack.c.l.b16 %v345
      %v449 = vunpack.c.h.b16 %v345
      %v450 = vunpack.c.l.b16 %v346
      %v451 = vunpack.c.h.b16 %v346
      %v452 = vunpack.c.l.b16 %v347
      %v453 = vunpack.c.h.b16 %v347
      %v454 = vunpack.c.l.b16 %v348
      %v455 = vunpack.c.h.b16 %v348
      %v456 = vunpack.c.l.b16 %v349
      %v457 = vunpack.c.h.b16 %v349
      %v458 = vunpack.c.l.b16 %v350
      %v459 = vunpack.c.h.b16 %v350
      %v460 = vunpack.c.l.b16 %v351
      %v461 = vunpack.c.h.b16 %v351
      %v462 = vpack.c.b16 %v448, %v446
      %v463 = vpack.c.b16 %v449, %v447
      %v464 = vpack.c.b16 %v452, %v450
      %v465 = vpack.c.b16 %v453, %v451
      %v466 = vpack.c.b16 %v456, %v454
      %v467 = vpack.c.b16 %v457, %v455
      %v468 = vpack.c.b16 %v460, %v458
      %v469 = vpack.c.b16 %v461, %v459
      %vm478 = vcmask 523264
      %v480 = vsel %vm478, %v422, 0
      %v483 = vsel %vm478, %v423, 0
      %v486 = vsel %vm478, %v424, 0
      %v489 = vsel %vm478, %v425, 0
      %v492 = vsel %vm478, %v426, 0
      %v495 = vsel %vm478, %v427, 0
      %v498 = vsel %vm478, %v428, 0
      %v501 = vsel %vm478, %v429, 0
      %v504 = vsel %vm478, %v430, 0
      %v507 = vsel %vm478, %v431, 0
      %v510 = vsel %vm478, %v432, 0
      %v513 = vsel %vm478, %v433, 0
      %v516 = vsel %vm478, %v434, 0
      %v519 = vsel %vm478, %v435, 0
      %v522 = vsel %vm478, %v436, 0
      %v525 = vsel %vm478, %v437, 0
      %527 = vmatpush.bf16.msra.mxu0 0
      %528 = vmatpush.bf16.msra.mxu0 0
      %529 = vmatpush.bf16.msra.mxu0 0
      %530 = vmatpush.bf16.msra.mxu0 0
      %531 = vmatpush.bf16.msra.mxu0 %v468
      %532 = vmatpush.bf16.msra.mxu0 %v466
      %533 = vmatpush.bf16.msra.mxu0 %v464
      %534 = vmatpush.bf16.msra.mxu0 %v462
      %535 = vmatmul.bf16.gmra.mxu0 %v480
      %v536 = vpop.f32.mrf.mxu0
      %v537 = vadd.f32 %v354, %v536
      %v538 = vpop.f32.mrf.mxu0
      %v539 = vadd.f32 %v354, %v538
      %540 = vmatmul.bf16.gmra.mxu0 %v483
      %v541 = vpop.f32.mrf.mxu0
      %v542 = vadd.f32 %v354, %v541
      %v543 = vpop.f32.mrf.mxu0
      %v544 = vadd.f32 %v354, %v543
      %545 = vmatmul.bf16.gmra.mxu0 %v486
      %v546 = vpop.f32.mrf.mxu0
      %v547 = vadd.f32 %v354, %v546
      %v548 = vpop.f32.mrf.mxu0
      %v549 = vadd.f32 %v354, %v548
      %550 = vmatmul.bf16.gmra.mxu0 %v489
      %v551 = vpop.f32.mrf.mxu0
      %v552 = vadd.f32 %v354, %v551
      %v553 = vpop.f32.mrf.mxu0
      %v554 = vadd.f32 %v354, %v553
      %555 = vmatmul.bf16.gmra.mxu0 %v492
      %v556 = vpop.f32.mrf.mxu0
      %v557 = vadd.f32 %v354, %v556
      %v558 = vpop.f32.mrf.mxu0
      %v559 = vadd.f32 %v354, %v558
      %560 = vmatmul.bf16.gmra.mxu0 %v495
      %v561 = vpop.f32.mrf.mxu0
      %v562 = vadd.f32 %v354, %v561
      %v563 = vpop.f32.mrf.mxu0
      %v564 = vadd.f32 %v354, %v563
      %565 = vmatmul.bf16.gmra.mxu0 %v498
      %v566 = vpop.f32.mrf.mxu0
      %v567 = vadd.f32 %v354, %v566
      %v568 = vpop.f32.mrf.mxu0
      %v569 = vadd.f32 %v354, %v568
      %570 = vmatmul.bf16.gmra.mxu0 %v501
      %v571 = vpop.f32.mrf.mxu0
      %v572 = vadd.f32 %v354, %v571
      %v573 = vpop.f32.mrf.mxu0
      %v574 = vadd.f32 %v354, %v573
      %575 = vmatmul.bf16.gmra.mxu0 %v504
      %v576 = vpop.f32.mrf.mxu0
      %v577 = vadd.f32 %v354, %v576
      %v578 = vpop.f32.mrf.mxu0
      %v579 = vadd.f32 %v354, %v578
      %580 = vmatmul.bf16.gmra.mxu0 %v507
      %v581 = vpop.f32.mrf.mxu0
      %v582 = vadd.f32 %v354, %v581
      %v583 = vpop.f32.mrf.mxu0
      %v584 = vadd.f32 %v354, %v583
      %585 = vmatmul.bf16.gmra.mxu0 %v510
      %v586 = vpop.f32.mrf.mxu0
      %v587 = vadd.f32 %v354, %v586
      %v588 = vpop.f32.mrf.mxu0
      %v589 = vadd.f32 %v354, %v588
      %590 = vmatmul.bf16.gmra.mxu0 %v513
      %v591 = vpop.f32.mrf.mxu0
      %v592 = vadd.f32 %v354, %v591
      %v593 = vpop.f32.mrf.mxu0
      %v594 = vadd.f32 %v354, %v593
      %595 = vmatmul.bf16.gmra.mxu0 %v516
      %v596 = vpop.f32.mrf.mxu0
      %v597 = vadd.f32 %v354, %v596
      %v598 = vpop.f32.mrf.mxu0
      %v599 = vadd.f32 %v354, %v598
      %600 = vmatmul.bf16.gmra.mxu0 %v519
      %v601 = vpop.f32.mrf.mxu0
      %v602 = vadd.f32 %v354, %v601
      %v603 = vpop.f32.mrf.mxu0
      %v604 = vadd.f32 %v354, %v603
      %605 = vmatmul.bf16.gmra.mxu0 %v522
      %v606 = vpop.f32.mrf.mxu0
      %v607 = vadd.f32 %v354, %v606
      %v608 = vpop.f32.mrf.mxu0
      %v609 = vadd.f32 %v354, %v608
      %610 = vmatmul.bf16.gmra.mxu0 %v525
      %v611 = vpop.f32.mrf.mxu0
      %v612 = vadd.f32 %v354, %v611
      %v613 = vpop.f32.mrf.mxu0
      %v614 = vadd.f32 %v354, %v613
      %615 = vdwg.mxu0
      %616 = vmatpush.bf16.msra.mxu0 0
      %617 = vmatpush.bf16.msra.mxu0 0
      %618 = vmatpush.bf16.msra.mxu0 0
      %619 = vmatpush.bf16.msra.mxu0 0
      %620 = vmatpush.bf16.msra.mxu0 %v469
      %621 = vmatpush.bf16.msra.mxu0 %v467
      %622 = vmatpush.bf16.msra.mxu0 %v465
      %623 = vmatpush.bf16.msra.mxu0 %v463
      %624 = vmatmul.bf16.gmra.mxu0 %v480
      %v625 = vpop.f32.mrf.mxu0
      %v626 = vadd.f32 %v355, %v625
      %v627 = vpop.f32.mrf.mxu0
      %v628 = vadd.f32 %v355, %v627
      %629 = vmatmul.bf16.gmra.mxu0 %v483
      %v630 = vpop.f32.mrf.mxu0
      %v631 = vadd.f32 %v355, %v630
      %v632 = vpop.f32.mrf.mxu0
      %v633 = vadd.f32 %v355, %v632
      %634 = vmatmul.bf16.gmra.mxu0 %v486
      %v635 = vpop.f32.mrf.mxu0
      %v636 = vadd.f32 %v355, %v635
      %v637 = vpop.f32.mrf.mxu0
      %v638 = vadd.f32 %v355, %v637
      %639 = vmatmul.bf16.gmra.mxu0 %v489
      %v640 = vpop.f32.mrf.mxu0
      %v641 = vadd.f32 %v355, %v640
      %v642 = vpop.f32.mrf.mxu0
      %v643 = vadd.f32 %v355, %v642
      %644 = vmatmul.bf16.gmra.mxu0 %v492
      %v645 = vpop.f32.mrf.mxu0
      %v646 = vadd.f32 %v355, %v645
      %v647 = vpop.f32.mrf.mxu0
      %v648 = vadd.f32 %v355, %v647
      %649 = vmatmul.bf16.gmra.mxu0 %v495
      %v650 = vpop.f32.mrf.mxu0
      %v651 = vadd.f32 %v355, %v650
      %v652 = vpop.f32.mrf.mxu0
      %v653 = vadd.f32 %v355, %v652
      %654 = vmatmul.bf16.gmra.mxu0 %v498
      %v655 = vpop.f32.mrf.mxu0
      %v656 = vadd.f32 %v355, %v655
      %v657 = vpop.f32.mrf.mxu0
      %v658 = vadd.f32 %v355, %v657
      %659 = vmatmul.bf16.gmra.mxu0 %v501
      %v660 = vpop.f32.mrf.mxu0
      %v661 = vadd.f32 %v355, %v660
      %v662 = vpop.f32.mrf.mxu0
      %v663 = vadd.f32 %v355, %v662
      %664 = vmatmul.bf16.gmra.mxu0 %v504
      %v665 = vpop.f32.mrf.mxu0
      %v666 = vadd.f32 %v355, %v665
      %v667 = vpop.f32.mrf.mxu0
      %v668 = vadd.f32 %v355, %v667
      %669 = vmatmul.bf16.gmra.mxu0 %v507
      %v670 = vpop.f32.mrf.mxu0
      %v671 = vadd.f32 %v355, %v670
      %v672 = vpop.f32.mrf.mxu0
      %v673 = vadd.f32 %v355, %v672
      %674 = vmatmul.bf16.gmra.mxu0 %v510
      %v675 = vpop.f32.mrf.mxu0
      %v676 = vadd.f32 %v355, %v675
      %v677 = vpop.f32.mrf.mxu0
      %v678 = vadd.f32 %v355, %v677
      %679 = vmatmul.bf16.gmra.mxu0 %v513
      %v680 = vpop.f32.mrf.mxu0
      %v681 = vadd.f32 %v355, %v680
      %v682 = vpop.f32.mrf.mxu0
      %v683 = vadd.f32 %v355, %v682
      %684 = vmatmul.bf16.gmra.mxu0 %v516
      %v685 = vpop.f32.mrf.mxu0
      %v686 = vadd.f32 %v355, %v685
      %v687 = vpop.f32.mrf.mxu0
      %v688 = vadd.f32 %v355, %v687
      %689 = vmatmul.bf16.gmra.mxu0 %v519
      %v690 = vpop.f32.mrf.mxu0
      %v691 = vadd.f32 %v355, %v690
      %v692 = vpop.f32.mrf.mxu0
      %v693 = vadd.f32 %v355, %v692
      %694 = vmatmul.bf16.gmra.mxu0 %v522
      %v695 = vpop.f32.mrf.mxu0
      %v696 = vadd.f32 %v355, %v695
      %v697 = vpop.f32.mrf.mxu0
      %v698 = vadd.f32 %v355, %v697
      %699 = vmatmul.bf16.gmra.mxu0 %v525
      %v700 = vpop.f32.mrf.mxu0
      %v701 = vadd.f32 %v355, %v700
      %v702 = vpop.f32.mrf.mxu0
      %v703 = vadd.f32 %v355, %v702
      %704 = vdwg.mxu0
      %v705 = vpack.c.bf16 %v626, %v537
      %v706 = vpack.c.bf16 %v628, %v539
      %v707 = vpack.c.bf16 %v631, %v542
      %v708 = vpack.c.bf16 %v633, %v544
      %v709 = vpack.c.bf16 %v636, %v547
      %v710 = vpack.c.bf16 %v638, %v549
      %v711 = vpack.c.bf16 %v641, %v552
      %v712 = vpack.c.bf16 %v643, %v554
      %v713 = vpack.c.bf16 %v646, %v557
      %v714 = vpack.c.bf16 %v648, %v559
      %v715 = vpack.c.bf16 %v651, %v562
      %v716 = vpack.c.bf16 %v653, %v564
      %v717 = vpack.c.bf16 %v656, %v567
      %v718 = vpack.c.bf16 %v658, %v569
      %v719 = vpack.c.bf16 %v661, %v572
      %v720 = vpack.c.bf16 %v663, %v574
      %v721 = vpack.c.bf16 %v666, %v577
      %v722 = vpack.c.bf16 %v668, %v579
      %v723 = vpack.c.bf16 %v671, %v582
      %v724 = vpack.c.bf16 %v673, %v584
      %v725 = vpack.c.bf16 %v676, %v587
      %v726 = vpack.c.bf16 %v678, %v589
      %v727 = vpack.c.bf16 %v681, %v592
      %v728 = vpack.c.bf16 %v683, %v594
      %v729 = vpack.c.bf16 %v686, %v597
      %v730 = vpack.c.bf16 %v688, %v599
      %v731 = vpack.c.bf16 %v691, %v602
      %v732 = vpack.c.bf16 %v693, %v604
      %v733 = vpack.c.bf16 %v696, %v607
      %v734 = vpack.c.bf16 %v698, %v609
      %v735 = vpack.c.bf16 %v701, %v612
      %v736 = vpack.c.bf16 %v703, %v614
      %vm737 = vcmask 519168
      %738 = vst.msk [vmem:[%s289] sm:$0xf] %vm737, %v705
      %739 = vst.msk [vmem:[%s289 + $0x4] sm:$0xf] %vm737, %v706
      %740 = vst.msk [vmem:[%s289 + $0x8] sm:$0xf] %vm737, %v707
      %741 = vst.msk [vmem:[%s289 + $0xc] sm:$0xf] %vm737, %v708
      %742 = vst.msk [vmem:[%s289 + $0x10] sm:$0xf] %vm737, %v709
      %743 = vst.msk [vmem:[%s289 + $0x14] sm:$0xf] %vm737, %v710
      %744 = vst.msk [vmem:[%s289 + $0x18] sm:$0xf] %vm737, %v711
      %745 = vst.msk [vmem:[%s289 + $0x1c] sm:$0xf] %vm737, %v712
      %746 = vst.msk [vmem:[%s289 + $0x20] sm:$0xf] %vm737, %v713
      %747 = vst.msk [vmem:[%s289 + $0x24] sm:$0xf] %vm737, %v714
      %748 = vst.msk [vmem:[%s289 + $0x28] sm:$0xf] %vm737, %v715
      %749 = vst.msk [vmem:[%s289 + $0x2c] sm:$0xf] %vm737, %v716
      %750 = vst.msk [vmem:[%s289 + $0x30] sm:$0xf] %vm737, %v717
      %751 = vst.msk [vmem:[%s289 + $0x34] sm:$0xf] %vm737, %v718
      %752 = vst.msk [vmem:[%s289 + $0x38] sm:$0xf] %vm737, %v719
      %753 = vst.msk [vmem:[%s289 + $0x3c] sm:$0xf] %vm737, %v720
      %754 = vst.msk [vmem:[%s289 + $0x40] sm:$0xf] %vm737, %v721
      %755 = vst.msk [vmem:[%s289 + $0x44] sm:$0xf] %vm737, %v722
      %756 = vst.msk [vmem:[%s289 + $0x48] sm:$0xf] %vm737, %v723
      %757 = vst.msk [vmem:[%s289 + $0x4c] sm:$0xf] %vm737, %v724
      %758 = vst.msk [vmem:[%s289 + $0x50] sm:$0xf] %vm737, %v725
      %759 = vst.msk [vmem:[%s289 + $0x54] sm:$0xf] %vm737, %v726
      %760 = vst.msk [vmem:[%s289 + $0x58] sm:$0xf] %vm737, %v727
      %761 = vst.msk [vmem:[%s289 + $0x5c] sm:$0xf] %vm737, %v728
      %762 = vst.msk [vmem:[%s289 + $0x60] sm:$0xf] %vm737, %v729
      %763 = vst.msk [vmem:[%s289 + $0x64] sm:$0xf] %vm737, %v730
      %764 = vst.msk [vmem:[%s289 + $0x68] sm:$0xf] %vm737, %v731
      %765 = vst.msk [vmem:[%s289 + $0x6c] sm:$0xf] %vm737, %v732
      %766 = vst.msk [vmem:[%s289 + $0x70] sm:$0xf] %vm737, %v733
      %767 = vst.msk [vmem:[%s289 + $0x74] sm:$0xf] %vm737, %v734
      %768 = vst.msk [vmem:[%s289 + $0x78] sm:$0xf] %vm737, %v735
      %769 = vst.msk [vmem:[%s289 + $0x7c] sm:$0xf] %vm737, %v736
      %802 = vrot.lane.b32.xlu0 %v705, 64
      %v803 = vpop.permute.xlu0 %802
      %804 = vrot.lane.b32.xlu0 %v706, 64
      %v805 = vpop.permute.xlu0 %804
      %806 = vrot.lane.b32.xlu0 %v707, 64
      %v807 = vpop.permute.xlu0 %806
      %808 = vrot.lane.b32.xlu0 %v708, 64
      %v809 = vpop.permute.xlu0 %808
      %810 = vrot.lane.b32.xlu0 %v709, 64
      %v811 = vpop.permute.xlu0 %810
      %812 = vrot.lane.b32.xlu0 %v710, 64
      %v813 = vpop.permute.xlu0 %812
      %814 = vrot.lane.b32.xlu0 %v711, 64
      %v815 = vpop.permute.xlu0 %814
      %816 = vrot.lane.b32.xlu0 %v712, 64
      %v817 = vpop.permute.xlu0 %816
      %818 = vrot.lane.b32.xlu0 %v713, 64
      %v819 = vpop.permute.xlu0 %818
      %820 = vrot.lane.b32.xlu0 %v714, 64
      %v821 = vpop.permute.xlu0 %820
      %822 = vrot.lane.b32.xlu0 %v715, 64
      %v823 = vpop.permute.xlu0 %822
      %824 = vrot.lane.b32.xlu0 %v716, 64
      %v825 = vpop.permute.xlu0 %824
      %826 = vrot.lane.b32.xlu0 %v717, 64
      %v827 = vpop.permute.xlu0 %826
      %828 = vrot.lane.b32.xlu0 %v718, 64
      %v829 = vpop.permute.xlu0 %828
      %830 = vrot.lane.b32.xlu0 %v719, 64
      %v831 = vpop.permute.xlu0 %830
      %832 = vrot.lane.b32.xlu0 %v720, 64
      %v833 = vpop.permute.xlu0 %832
      %834 = vrot.lane.b32.xlu0 %v721, 64
      %v835 = vpop.permute.xlu0 %834
      %836 = vrot.lane.b32.xlu0 %v722, 64
      %v837 = vpop.permute.xlu0 %836
      %838 = vrot.lane.b32.xlu0 %v723, 64
      %v839 = vpop.permute.xlu0 %838
      %840 = vrot.lane.b32.xlu0 %v724, 64
      %v841 = vpop.permute.xlu0 %840
      %842 = vrot.lane.b32.xlu0 %v725, 64
      %v843 = vpop.permute.xlu0 %842
      %844 = vrot.lane.b32.xlu0 %v726, 64
      %v845 = vpop.permute.xlu0 %844
      %846 = vrot.lane.b32.xlu0 %v727, 64
      %v847 = vpop.permute.xlu0 %846
      %848 = vrot.lane.b32.xlu0 %v728, 64
      %v849 = vpop.permute.xlu0 %848
      %850 = vrot.lane.b32.xlu0 %v729, 64
      %v851 = vpop.permute.xlu0 %850
      %852 = vrot.lane.b32.xlu0 %v730, 64
      %v853 = vpop.permute.xlu0 %852
      %854 = vrot.lane.b32.xlu0 %v731, 64
      %v855 = vpop.permute.xlu0 %854
      %856 = vrot.lane.b32.xlu0 %v732, 64
      %v857 = vpop.permute.xlu0 %856
      %858 = vrot.lane.b32.xlu0 %v733, 64
      %v859 = vpop.permute.xlu0 %858
      %860 = vrot.lane.b32.xlu0 %v734, 64
      %v861 = vpop.permute.xlu0 %860
      %862 = vrot.lane.b32.xlu0 %v735, 64
      %v863 = vpop.permute.xlu0 %862
      %864 = vrot.lane.b32.xlu0 %v736, 64
      %v865 = vpop.permute.xlu0 %864
      %898 = vst.msk [vmem:[%s299] sm:$0xf] %vm737, %v803
      %899 = vst.msk [vmem:[%s299 + $0x4] sm:$0xf] %vm737, %v805
      %900 = vst.msk [vmem:[%s299 + $0x8] sm:$0xf] %vm737, %v807
      %901 = vst.msk [vmem:[%s299 + $0xc] sm:$0xf] %vm737, %v809
      %902 = vst.msk [vmem:[%s299 + $0x10] sm:$0xf] %vm737, %v811
      %903 = vst.msk [vmem:[%s299 + $0x14] sm:$0xf] %vm737, %v813
      %904 = vst.msk [vmem:[%s299 + $0x18] sm:$0xf] %vm737, %v815
      %905 = vst.msk [vmem:[%s299 + $0x1c] sm:$0xf] %vm737, %v817
      %906 = vst.msk [vmem:[%s299 + $0x20] sm:$0xf] %vm737, %v819
      %907 = vst.msk [vmem:[%s299 + $0x24] sm:$0xf] %vm737, %v821
      %908 = vst.msk [vmem:[%s299 + $0x28] sm:$0xf] %vm737, %v823
      %909 = vst.msk [vmem:[%s299 + $0x2c] sm:$0xf] %vm737, %v825
      %910 = vst.msk [vmem:[%s299 + $0x30] sm:$0xf] %vm737, %v827
      %911 = vst.msk [vmem:[%s299 + $0x34] sm:$0xf] %vm737, %v829
      %912 = vst.msk [vmem:[%s299 + $0x38] sm:$0xf] %vm737, %v831
      %913 = vst.msk [vmem:[%s299 + $0x3c] sm:$0xf] %vm737, %v833
      %914 = vst.msk [vmem:[%s299 + $0x40] sm:$0xf] %vm737, %v835
      %915 = vst.msk [vmem:[%s299 + $0x44] sm:$0xf] %vm737, %v837
      %916 = vst.msk [vmem:[%s299 + $0x48] sm:$0xf] %vm737, %v839
      %917 = vst.msk [vmem:[%s299 + $0x4c] sm:$0xf] %vm737, %v841
      %918 = vst.msk [vmem:[%s299 + $0x50] sm:$0xf] %vm737, %v843
      %919 = vst.msk [vmem:[%s299 + $0x54] sm:$0xf] %vm737, %v845
      %920 = vst.msk [vmem:[%s299 + $0x58] sm:$0xf] %vm737, %v847
      %921 = vst.msk [vmem:[%s299 + $0x5c] sm:$0xf] %vm737, %v849
      %922 = vst.msk [vmem:[%s299 + $0x60] sm:$0xf] %vm737, %v851
      %923 = vst.msk [vmem:[%s299 + $0x64] sm:$0xf] %vm737, %v853
      %924 = vst.msk [vmem:[%s299 + $0x68] sm:$0xf] %vm737, %v855
      %925 = vst.msk [vmem:[%s299 + $0x6c] sm:$0xf] %vm737, %v857
      %926 = vst.msk [vmem:[%s299 + $0x70] sm:$0xf] %vm737, %v859
      %927 = vst.msk [vmem:[%s299 + $0x74] sm:$0xf] %vm737, %v861
      %928 = vst.msk [vmem:[%s299 + $0x78] sm:$0xf] %vm737, %v863
      %929 = vst.msk [vmem:[%s299 + $0x7c] sm:$0xf] %vm737, %v865
      %v930 = vrot.slane %v705, 4
      %v931 = vrot.slane %v706, 4
      %v932 = vrot.slane %v707, 4
      %v933 = vrot.slane %v708, 4
      %v934 = vrot.slane %v709, 4
      %v935 = vrot.slane %v710, 4
      %v936 = vrot.slane %v711, 4
      %v937 = vrot.slane %v712, 4
      %v938 = vrot.slane %v713, 4
      %v939 = vrot.slane %v714, 4
      %v940 = vrot.slane %v715, 4
      %v941 = vrot.slane %v716, 4
      %v942 = vrot.slane %v717, 4
      %v943 = vrot.slane %v718, 4
      %v944 = vrot.slane %v719, 4
      %v945 = vrot.slane %v720, 4
      %v946 = vrot.slane %v721, 4
      %v947 = vrot.slane %v722, 4
      %v948 = vrot.slane %v723, 4
      %v949 = vrot.slane %v724, 4
      %v950 = vrot.slane %v725, 4
      %v951 = vrot.slane %v726, 4
      %v952 = vrot.slane %v727, 4
      %v953 = vrot.slane %v728, 4
      %v954 = vrot.slane %v729, 4
      %v955 = vrot.slane %v730, 4
      %v956 = vrot.slane %v731, 4
      %v957 = vrot.slane %v732, 4
      %v958 = vrot.slane %v733, 4
      %v959 = vrot.slane %v734, 4
      %v960 = vrot.slane %v735, 4
      %v961 = vrot.slane %v736, 4
      %994 = vst.msk [vmem:[%s309] sm:$0xf] %vm737, %v930
      %995 = vst.msk [vmem:[%s309 + $0x4] sm:$0xf] %vm737, %v931
      %996 = vst.msk [vmem:[%s309 + $0x8] sm:$0xf] %vm737, %v932
      %997 = vst.msk [vmem:[%s309 + $0xc] sm:$0xf] %vm737, %v933
      %998 = vst.msk [vmem:[%s309 + $0x10] sm:$0xf] %vm737, %v934
      %999 = vst.msk [vmem:[%s309 + $0x14] sm:$0xf] %vm737, %v935
      %1000 = vst.msk [vmem:[%s309 + $0x18] sm:$0xf] %vm737, %v936
      %1001 = vst.msk [vmem:[%s309 + $0x1c] sm:$0xf] %vm737, %v937
      %1002 = vst.msk [vmem:[%s309 + $0x20] sm:$0xf] %vm737, %v938
      %1003 = vst.msk [vmem:[%s309 + $0x24] sm:$0xf] %vm737, %v939
      %1004 = vst.msk [vmem:[%s309 + $0x28] sm:$0xf] %vm737, %v940
      %1005 = vst.msk [vmem:[%s309 + $0x2c] sm:$0xf] %vm737, %v941
      %1006 = vst.msk [vmem:[%s309 + $0x30] sm:$0xf] %vm737, %v942
      %1007 = vst.msk [vmem:[%s309 + $0x34] sm:$0xf] %vm737, %v943
      %1008 = vst.msk [vmem:[%s309 + $0x38] sm:$0xf] %vm737, %v944
      %1009 = vst.msk [vmem:[%s309 + $0x3c] sm:$0xf] %vm737, %v945
      %1010 = vst.msk [vmem:[%s309 + $0x40] sm:$0xf] %vm737, %v946
      %1011 = vst.msk [vmem:[%s309 + $0x44] sm:$0xf] %vm737, %v947
      %1012 = vst.msk [vmem:[%s309 + $0x48] sm:$0xf] %vm737, %v948
      %1013 = vst.msk [vmem:[%s309 + $0x4c] sm:$0xf] %vm737, %v949
      %1014 = vst.msk [vmem:[%s309 + $0x50] sm:$0xf] %vm737, %v950
      %1015 = vst.msk [vmem:[%s309 + $0x54] sm:$0xf] %vm737, %v951
      %1016 = vst.msk [vmem:[%s309 + $0x58] sm:$0xf] %vm737, %v952
      %1017 = vst.msk [vmem:[%s309 + $0x5c] sm:$0xf] %vm737, %v953
      %1018 = vst.msk [vmem:[%s309 + $0x60] sm:$0xf] %vm737, %v954
      %1019 = vst.msk [vmem:[%s309 + $0x64] sm:$0xf] %vm737, %v955
      %1020 = vst.msk [vmem:[%s309 + $0x68] sm:$0xf] %vm737, %v956
      %1021 = vst.msk [vmem:[%s309 + $0x6c] sm:$0xf] %vm737, %v957
      %1022 = vst.msk [vmem:[%s309 + $0x70] sm:$0xf] %vm737, %v958
      %1023 = vst.msk [vmem:[%s309 + $0x74] sm:$0xf] %vm737, %v959
      %1024 = vst.msk [vmem:[%s309 + $0x78] sm:$0xf] %vm737, %v960
      %1025 = vst.msk [vmem:[%s309 + $0x7c] sm:$0xf] %vm737, %v961
      %s1026 = smul.u32 32, %s22
      %p1027 = scmp.lt.s32.totalorder %s21, 1
      %s1028 = scalar_select %p1027, %s21, 1
      %p1029 = scmp.lt.s32.totalorder %s1026, 31
      %s1030 = scalar_select %p1029, %s1026, 31
      %s1031 = smul.addr %s1028, 32
      %s1032 = sadd.s32 %s1030, %s1031
      %s1033 = smul.addr %s1032, 4
      %s1034 = scalar_lea.vmem %s3, %s1033
      %s1035 = smul.u32 32, %s22
      %p1036 = scmp.lt.s32.totalorder %s21, 1
      %s1037 = scalar_select %p1036, %s21, 1
      %p1038 = scmp.lt.s32.totalorder %s1035, 31
      %s1039 = scalar_select %p1038, %s1035, 31
      %s1040 = smul.addr %s1037, 32
      %s1041 = sadd.s32 %s1039, %s1040
      %s1042 = smul.addr %s1041, 4
      %s1043 = scalar_lea.vmem %s4, %s1042
      %s1044 = smul.u32 32, %s22
      %p1045 = scmp.lt.s32.totalorder %s21, 1
      %s1046 = scalar_select %p1045, %s21, 1
      %p1047 = scmp.lt.s32.totalorder %s1044, 31
      %s1048 = scalar_select %p1047, %s1044, 31
      %s1049 = smul.addr %s1046, 32
      %s1050 = sadd.s32 %s1048, %s1049
      %s1051 = smul.addr %s1050, 4
      %s1052 = scalar_lea.vmem %s5, %s1051
      // Predicated region
      $region33: #{tpu_custom_call.1} parent=31 // pred_check
        %p1053 = pneg %p119
      $region34: #{tpu_custom_call.1} parent=31 // pred_check_branch
        %1055 = sbr.rel (%p1053) target = $region36
      $region35: #{tpu_custom_call.1} parent=31 // pred_region
        %s1056 = smul.u32 32, %s22
      $region36: #{tpu_custom_call.1} parent=31 // pred_fallthru
        _
      // Predicated region
      $region37: #{tpu_custom_call.1} parent=31 // pred_check
        %p1057 = pneg %p147
      $region38: #{tpu_custom_call.1} parent=31 // pred_check_branch
        %1059 = sbr.rel (%p1057) target = $region40
      $region39: #{tpu_custom_call.1} parent=31 // pred_region
        %s1060 = smul.u32 32, %s22
      $region40: #{tpu_custom_call.1} parent=31 // pred_fallthru
        _
      // Predicated region
      $region41: #{tpu_custom_call.1} parent=31 // pred_check
        %p1061 = pneg %p175
      $region42: #{tpu_custom_call.1} parent=31 // pred_check_branch
        %1063 = sbr.rel (%p1061) target = $region44
      $region43: #{tpu_custom_call.1} parent=31 // pred_region
        %s1064 = smul.u32 32, %s22
      $region44: #{tpu_custom_call.1} parent=31 // pred_fallthru
        _
    $region32: #{tpu_custom_call.1} parent=5 // pred_fallthru
      _
    %p1065 = scmp.le.s32.totalorder 2, %s12
    // Predicated region
    $region45: #{tpu_custom_call.1} parent=5 // pred_check
      %p1066 = pneg %p1065
    $region46: #{tpu_custom_call.1} parent=5 // pred_check_branch
      %1068 = sbr.rel (%p1066) target = $region48
    $region47: #{tpu_custom_call.1} parent=5 // pred_region
      %s1069 = ssub.s32 %s12, 2
      // Predicated region
      $region49: #{tpu_custom_call.1} parent=47 // pred_check
        %p1070 = pneg %p125
      $region50: #{tpu_custom_call.1} parent=47 // pred_check_branch
        %1072 = sbr.rel (%p1070) target = $region52
      $region51: #{tpu_custom_call.1} parent=47 // pred_region
        %s1073 = smul.u32 32, %s24
        %p1074 = scmp.lt.s32.totalorder %s23, 1
        %s1075 = scalar_select %p1074, %s23, 1
        %p1076 = scmp.lt.s32.totalorder %s1073, 31
        %s1077 = scalar_select %p1076, %s1073, 31
        %s1078 = smul.addr %s1075, 32
        %s1079 = sadd.s32 %s1077, %s1078
        %s1080 = smul.addr %s1079, 4
        %s1081 = scalar_lea.vmem %s3, %s1080
      $region52: #{tpu_custom_call.1} parent=47 // pred_fallthru
        _
      // Predicated region
      $region53: #{tpu_custom_call.1} parent=47 // pred_check
        %p1082 = pneg %p153
      $region54: #{tpu_custom_call.1} parent=47 // pred_check_branch
        %1084 = sbr.rel (%p1082) target = $region56
      $region55: #{tpu_custom_call.1} parent=47 // pred_region
        %s1085 = smul.u32 32, %s24
        %p1086 = scmp.lt.s32.totalorder %s23, 1
        %s1087 = scalar_select %p1086, %s23, 1
        %p1088 = scmp.lt.s32.totalorder %s1085, 31
        %s1089 = scalar_select %p1088, %s1085, 31
        %s1090 = smul.addr %s1087, 32
        %s1091 = sadd.s32 %s1089, %s1090
        %s1092 = smul.addr %s1091, 4
        %s1093 = scalar_lea.vmem %s4, %s1092
      $region56: #{tpu_custom_call.1} parent=47 // pred_fallthru
        _
      // Predicated region
      $region57: #{tpu_custom_call.1} parent=47 // pred_check
        %p1094 = pneg %p181
      $region58: #{tpu_custom_call.1} parent=47 // pred_check_branch
        %1096 = sbr.rel (%p1094) target = $region60
      $region59: #{tpu_custom_call.1} parent=47 // pred_region
        %s1097 = smul.u32 32, %s24
        %p1098 = scmp.lt.s32.totalorder %s23, 1
        %s1099 = scalar_select %p1098, %s23, 1
        %p1100 = scmp.lt.s32.totalorder %s1097, 31
        %s1101 = scalar_select %p1100, %s1097, 31
        %s1102 = smul.addr %s1099, 32
        %s1103 = sadd.s32 %s1101, %s1102
        %s1104 = smul.addr %s1103, 4
        %s1105 = scalar_lea.vmem %s5, %s1104
      $region60: #{tpu_custom_call.1} parent=47 // pred_fallthru
        _
    $region48: #{tpu_custom_call.1} parent=5 // pred_fallthru
      _
  $region6: #{tpu_custom_call.1} parent=0 // loop_footer
    %s16 = sadd.s32 1, %s12
  $region7: #{tpu_custom_call.1} parent=0 // loop_footer_branch
    %11 = sbr.rel target = $region3
  $region8: #{tpu_custom_call.1} parent=0 // loop_exit
    _

</llo_original>
